<compile_context>
chip_gen: v5e
topology: v5e:2x2
jax: 0.10.0
libtpu: 0.0.40
codegen_flags: <defaults>
</compile_context>

<pallas_src>
import math
import jax
import jax.numpy as jnp
from jax.experimental import pallas as pl
from jax.experimental.pallas import tpu as pltpu

LANES = 128
SUBLANES = 8


def _round_up(x, m):
    return ((x + m - 1) // m) * m


# ---------------------------------------------------------------------------
# Fused decoder-step kernel
# ---------------------------------------------------------------------------

def _decoder_step_kernel(tok_ref, emb_ref, h_ref,
                         wih_ref, whh_ref, bih_ref, bhh_ref,
                         wv_ref, bv_ref,
                         pred_ref, hnew_ref):
    """One full decoder step, fully in VMEM.

    tok:  [Bp, 1] int32            emb: [Vp, Hp]
    h:    [n_layers, Bp, Hp]       wih/whh: [n_layers, Hp, 3*Hp] (gate-padded)
    bih/bhh: [n_layers, 1, 3*Hp]   wv: [Hp, Vp]  bv: [1, Vp]
    outputs: pred [Bp, Vp], hnew [n_layers, Bp, Hp]
    """
    Bp = tok_ref.shape[0]
    Vp = emb_ref.shape[0]
    Hp = whh_ref.shape[1]
    n_layers = h_ref.shape[0]

    # Embedding lookup as a one-hot matmul (lane-aligned, stays on the MXU).
    tok = tok_ref[...]                                                # [Bp, 1]
    lane_ids = jax.lax.broadcasted_iota(jnp.int32, (Bp, Vp), 1)
    one_hot = (lane_ids == tok).astype(jnp.float32)                   # [Bp, Vp]
    x = jnp.dot(one_hot, emb_ref[...], preferred_element_type=jnp.float32)  # [Bp, Hp]
    # dropout: identity in eval mode.

    # Stacked GRU cells (seq_len == 1). Each gate block is Hp(=128)-lane aligned.
    for layer in range(n_layers):                                     # static unroll
        h = h_ref[layer]                                              # [Bp, Hp]
        gi = jnp.dot(x, wih_ref[layer], preferred_element_type=jnp.float32) + bih_ref[layer]
        gh = jnp.dot(h, whh_ref[layer], preferred_element_type=jnp.float32) + bhh_ref[layer]
        i_r, i_z, i_n = gi[:, :Hp], gi[:, Hp:2 * Hp], gi[:, 2 * Hp:]
        h_r, h_z, h_n = gh[:, :Hp], gh[:, Hp:2 * Hp], gh[:, 2 * Hp:]
        r = jax.nn.sigmoid(i_r + h_r)
        z = jax.nn.sigmoid(i_z + h_z)
        n = jnp.tanh(i_n + r * h_n)
        h_new = (1.0 - z) * n + z * h
        hnew_ref[layer] = h_new
        x = h_new

    # embedding2vocab1 -> 2 -> 3 collapsed into one matmul (no nonlinearity between them).
    pred_ref[...] = jnp.dot(x, wv_ref[...], preferred_element_type=jnp.float32) + bv_ref[...]


def decoder_step(packed, tokens, hidden):
    """tokens: [B] int32; hidden: [n_layers, B, H].
    Returns (prediction [B, vocab], new_hidden [n_layers, B, H])."""
    n_layers, B, H = hidden.shape
    V = packed["vocab_size"]
    Bp, Hp, Vp = packed["Bp"], packed["Hp"], packed["Vp"]

    tok_pad = jnp.zeros((Bp, 1), jnp.int32).at[:B, 0].set(tokens.astype(jnp.int32))
    h_pad = jnp.zeros((n_layers, Bp, Hp), jnp.float32).at[:, :B, :H].set(hidden)

    vmem = pl.BlockSpec(memory_space=pltpu.MemorySpace.VMEM)
    pred_pad, hnew_pad = pl.pallas_call(
        _decoder_step_kernel,
        out_shape=(jax.ShapeDtypeStruct((Bp, Vp), jnp.float32),
                   jax.ShapeDtypeStruct((n_layers, Bp, Hp), jnp.float32)),
        in_specs=[vmem] * 9,
        out_specs=(vmem, vmem),
    )(tok_pad, packed["emb"], h_pad,
      packed["w_ih"], packed["w_hh"], packed["b_ih"], packed["b_hh"],
      packed["w_vocab"], packed["b_vocab"])

    return pred_pad[:B, :V], hnew_pad[:, :B, :H]


# ---------------------------------------------------------------------------
# Parameter construction (PyTorch-style) and lane-aligned packing
# ---------------------------------------------------------------------------

def init_decoder_params(key, cn_vocab_size, emb_dim, hid_dim, n_layers):
    """Raw PyTorch-layout parameters (untransposed, unpadded)."""
    H = hid_dim * 2                           # == self.hid_dim in the PyTorch module
    keys = jax.random.split(key, 1 + 4 * n_layers + 6)
    ki = iter(keys)

    params = {"embedding": jax.random.normal(next(ki), (cn_vocab_size, emb_dim), jnp.float32)}

    k = 1.0 / math.sqrt(H)
    gru = []
    for layer in range(n_layers):
        in_dim = emb_dim if layer == 0 else H
        gru.append(dict(
            w_ih=jax.random.uniform(next(ki), (3 * H, in_dim), jnp.float32, -k, k),
            w_hh=jax.random.uniform(next(ki), (3 * H, H), jnp.float32, -k, k),
            b_ih=jax.random.uniform(next(ki), (3 * H,), jnp.float32, -k, k),
            b_hh=jax.random.uniform(next(ki), (3 * H,), jnp.float32, -k, k),
        ))
    params["gru"] = gru

    def linear(kw, kb, fan_in, fan_out):
        kk = 1.0 / math.sqrt(fan_in)
        return (jax.random.uniform(kw, (fan_out, fan_in), jnp.float32, -kk, kk),
                jax.random.uniform(kb, (fan_out,), jnp.float32, -kk, kk))

    params["w1"], params["b1"] = linear(next(ki), next(ki), H, 2 * H)
    params["w2"], params["b2"] = linear(next(ki), next(ki), 2 * H, 4 * H)
    params["w3"], params["b3"] = linear(next(ki), next(ki), 4 * H, cn_vocab_size)
    return params


def pack_decoder_params(raw, batch):
    """Transpose, gate-split, zero-pad to (8,128)-aligned shapes, fuse the vocab MLP."""
    emb = raw["embedding"]                    # [V, emb_dim]
    V, emb_dim = emb.shape
    H = raw["gru"][0]["w_hh"].shape[1]
    n_layers = len(raw["gru"])

    Hp = _round_up(max(H, emb_dim), LANES)    # shared padded feature width (128)
    Vp = _round_up(V, LANES)
    Bp = _round_up(max(batch, SUBLANES), SUBLANES)

    def pad2(a, r, c):
        return jnp.pad(a, ((0, r - a.shape[0]), (0, c - a.shape[1])))

    # Embedding table padded: rows = one-hot contraction dim, cols = feature width.
    emb_p = pad2(emb, Vp, Hp)

    # GRU weights: split per gate, transpose to [in, H], pad each gate to [Hp, Hp]
    # so gate slices in the kernel land exactly on 128-lane boundaries.
    w_ih_l, w_hh_l, b_ih_l, b_hh_l = [], [], [], []
    for layer in range(n_layers):
        g = raw["gru"][layer]

        def pack_w(w):                        # w: [3H, in_dim] (PyTorch layout)
            gates = [pad2(w[i * H:(i + 1) * H].T, Hp, Hp) for i in range(3)]
            return jnp.concatenate(gates, axis=1)           # [Hp, 3*Hp]

        def pack_b(b):                        # b: [3H]
            gates = [jnp.pad(b[i * H:(i + 1) * H], (0, Hp - H)) for i in range(3)]
            return jnp.concatenate(gates)[None, :]          # [1, 3*Hp]

        w_ih_l.append(pack_w(g["w_ih"]))
        w_hh_l.append(pack_w(g["w_hh"]))
        b_ih_l.append(pack_b(g["b_ih"]))
        b_hh_l.append(pack_b(g["b_hh"]))

    # Collapse embedding2vocab1/2/3: y = ((x W1^T + b1) W2^T + b2) W3^T + b3.
    hi = jax.lax.Precision.HIGHEST
    w1t, w2t, w3t = raw["w1"].T, raw["w2"].T, raw["w3"].T
    w_vocab = jnp.dot(jnp.dot(w1t, w2t, precision=hi), w3t, precision=hi)       # [H, V]
    b_vocab = (jnp.dot(jnp.dot(raw["b1"], w2t, precision=hi), w3t, precision=hi)
               + jnp.dot(raw["b2"], w3t, precision=hi) + raw["b3"])              # [V]

    return dict(
        emb=emb_p,
        w_ih=jnp.stack(w_ih_l), w_hh=jnp.stack(w_hh_l),
        b_ih=jnp.stack(b_ih_l), b_hh=jnp.stack(b_hh_l),
        w_vocab=pad2(w_vocab, Hp, Vp),
        b_vocab=jnp.pad(b_vocab, (0, Vp - V))[None, :],
        vocab_size=V, Bp=Bp, Hp=Hp, Vp=Vp,
    )


# ---------------------------------------------------------------------------
# Pure-JAX reference (mirrors the PyTorch forward) for validation
# ---------------------------------------------------------------------------

def decoder_forward_ref(raw, tokens, hidden):
    hi = jax.lax.Precision.HIGHEST
    H = hidden.shape[-1]
    x = raw["embedding"][tokens]
    new_h = []
    for g in raw["gru"]:
        h = hidden[len(new_h)]
        gi = jnp.dot(x, g["w_ih"].T, precision=hi) + g["b_ih"]
        gh = jnp.dot(h, g["w_hh"].T, precision=hi) + g["b_hh"]
        i_r, i_z, i_n = gi[:, :H], gi[:, H:2 * H], gi[:, 2 * H:]
        h_r, h_z, h_n = gh[:, :H], gh[:, H:2 * H], gh[:, 2 * H:]
        r = jax.nn.sigmoid(i_r + h_r)
        z = jax.nn.sigmoid(i_z + h_z)
        n = jnp.tanh(i_n + r * h_n)
        h = (1.0 - z) * n + z * h
        new_h.append(h)
        x = h
    h1 = jnp.dot(x, raw["w1"].T, precision=hi) + raw["b1"]
    h2 = jnp.dot(h1, raw["w2"].T, precision=hi) + raw["b2"]
    pred = jnp.dot(h2, raw["w3"].T, precision=hi) + raw["b3"]
    return pred, jnp.stack(new_h)


# ---------------------------------------------------------------------------
# Main
# ---------------------------------------------------------------------------

if __name__ == "__main__":
    cn_vocab_size = 64
    emb_dim = 32
    hid_dim = 16          # module uses hid_dim * 2 = 32 internally
    n_layers = 2
    batch = 2
    H = hid_dim * 2

    key = jax.random.PRNGKey(0)
    k_params, k_tok, k_hid = jax.random.split(key, 3)

    raw = init_decoder_params(k_params, cn_vocab_size, emb_dim, hid_dim, n_layers)
    packed = pack_decoder_params(raw, batch)

    tokens = jax.random.randint(k_tok, (batch,), 0, cn_vocab_size, dtype=jnp.int32)
    hidden = jax.random.normal(k_hid, (n_layers, batch, H), jnp.float32)

    prediction, new_hidden = decoder_step(packed, tokens, hidden)
    prediction = jax.block_until_ready(prediction)
    new_hidden = jax.block_until_ready(new_hidden)

    assert prediction.shape == (batch, cn_vocab_size), prediction.shape
    assert new_hidden.shape == (n_layers, batch, H), new_hidden.shape
    assert bool(jnp.all(jnp.isfinite(prediction))) and bool(jnp.all(jnp.isfinite(new_hidden)))

    # Validate against a pure-JAX port of the PyTorch forward (default-precision MXU
    # passes in the kernel + fused vocab MLP => small fp differences are expected).
    pred_ref, hid_ref = decoder_forward_ref(raw, tokens, hidden)
    assert jnp.allclose(prediction, pred_ref, rtol=2e-2, atol=2e-2), \
        float(jnp.max(jnp.abs(prediction - pred_ref)))
    assert jnp.allclose(new_hidden, hid_ref, rtol=2e-2, atol=2e-2), \
        float(jnp.max(jnp.abs(new_hidden - hid_ref)))

    print("KERNEL_OK")
</pallas_src>

<mosaic_0001>
module attributes {stable_mosaic.version = 11 : i64} {
  func.func @_decoder_step_kernel(%arg0: memref<8x1xi32, #tpu.memory_space<vmem>>, %arg1: memref<128x128xf32, #tpu.memory_space<vmem>>, %arg2: memref<2x8x128xf32, #tpu.memory_space<vmem>>, %arg3: memref<2x128x384xf32, #tpu.memory_space<vmem>>, %arg4: memref<2x128x384xf32, #tpu.memory_space<vmem>>, %arg5: memref<2x1x384xf32, #tpu.memory_space<vmem>>, %arg6: memref<2x1x384xf32, #tpu.memory_space<vmem>>, %arg7: memref<128x128xf32, #tpu.memory_space<vmem>>, %arg8: memref<1x128xf32, #tpu.memory_space<vmem>>, %arg9: memref<8x128xf32, #tpu.memory_space<vmem>>, %arg10: memref<2x8x128xf32, #tpu.memory_space<vmem>>) attributes {dimension_semantics = [], scalar_prefetch = 0 : i64, scratch_operands = 0 : i64, tpu.core_type = #tpu.core_type<tc>} {
    %c0 = arith.constant 0 : index
    %c0_0 = arith.constant 0 : index
    %0 = vector.load %arg0[%c0, %c0_0] : memref<8x1xi32, #tpu.memory_space<vmem>>, vector<8x1xi32>
    %1 = tpu.iota {dimensions = array<i32: 1>} : vector<8x128xi32>
    %2 = vector.broadcast %0 : vector<8x1xi32> to vector<8x128xi32>
    %3 = arith.cmpi eq, %1, %2 : vector<8x128xi32>
    %4 = arith.extui %3 : vector<8x128xi1> to vector<8x128xi32>
    %5 = arith.sitofp %4 : vector<8x128xi32> to vector<8x128xf32>
    %c0_1 = arith.constant 0 : index
    %c0_2 = arith.constant 0 : index
    %6 = vector.load %arg1[%c0_1, %c0_2] : memref<128x128xf32, #tpu.memory_space<vmem>>, vector<128x128xf32>
    %cst = arith.constant dense<0.000000e+00> : vector<8x128xf32>
    %7 = tpu.matmul %5, %6, %cst {dimension_numbers = #tpu.dot_dimension_numbers<[1], [0], [0], [1], [0, 0, 1, 1], [], []>} : vector<8x128xf32>, vector<128x128xf32>, vector<8x128xf32> -> vector<8x128xf32>
    %c0_3 = arith.constant 0 : index
    %c0_4 = arith.constant 0 : index
    %c0_5 = arith.constant 0 : index
    %8 = vector.load %arg2[%c0_3, %c0_4, %c0_5] : memref<2x8x128xf32, #tpu.memory_space<vmem>>, vector<1x8x128xf32>
    %9 = vector.shape_cast %8 : vector<1x8x128xf32> to vector<8x128xf32>
    %c0_6 = arith.constant 0 : index
    %c0_7 = arith.constant 0 : index
    %c0_8 = arith.constant 0 : index
    %10 = vector.load %arg3[%c0_6, %c0_7, %c0_8] : memref<2x128x384xf32, #tpu.memory_space<vmem>>, vector<1x128x384xf32>
    %11 = vector.shape_cast %10 : vector<1x128x384xf32> to vector<128x384xf32>
    %cst_9 = arith.constant dense<0.000000e+00> : vector<8x384xf32>
    %12 = tpu.matmul %7, %11, %cst_9 {dimension_numbers = #tpu.dot_dimension_numbers<[1], [0], [0], [1], [0, 0, 1, 1], [], []>} : vector<8x128xf32>, vector<128x384xf32>, vector<8x384xf32> -> vector<8x384xf32>
    %c0_10 = arith.constant 0 : index
    %c0_11 = arith.constant 0 : index
    %c0_12 = arith.constant 0 : index
    %13 = vector.load %arg5[%c0_10, %c0_11, %c0_12] : memref<2x1x384xf32, #tpu.memory_space<vmem>>, vector<1x1x384xf32>
    %14 = vector.shape_cast %13 : vector<1x1x384xf32> to vector<1x384xf32>
    %15 = vector.broadcast %14 : vector<1x384xf32> to vector<8x384xf32>
    %16 = arith.addf %12, %15 : vector<8x384xf32>
    %c0_13 = arith.constant 0 : index
    %c0_14 = arith.constant 0 : index
    %c0_15 = arith.constant 0 : index
    %17 = vector.load %arg4[%c0_13, %c0_14, %c0_15] : memref<2x128x384xf32, #tpu.memory_space<vmem>>, vector<1x128x384xf32>
    %18 = vector.shape_cast %17 : vector<1x128x384xf32> to vector<128x384xf32>
    %cst_16 = arith.constant dense<0.000000e+00> : vector<8x384xf32>
    %19 = tpu.matmul %9, %18, %cst_16 {dimension_numbers = #tpu.dot_dimension_numbers<[1], [0], [0], [1], [0, 0, 1, 1], [], []>} : vector<8x128xf32>, vector<128x384xf32>, vector<8x384xf32> -> vector<8x384xf32>
    %c0_17 = arith.constant 0 : index
    %c0_18 = arith.constant 0 : index
    %c0_19 = arith.constant 0 : index
    %20 = vector.load %arg6[%c0_17, %c0_18, %c0_19] : memref<2x1x384xf32, #tpu.memory_space<vmem>>, vector<1x1x384xf32>
    %21 = vector.shape_cast %20 : vector<1x1x384xf32> to vector<1x384xf32>
    %22 = vector.broadcast %21 : vector<1x384xf32> to vector<8x384xf32>
    %23 = arith.addf %19, %22 : vector<8x384xf32>
    %24 = vector.extract_strided_slice %16 {offsets = [0, 0], sizes = [8, 128], strides = [1, 1]} : vector<8x384xf32> to vector<8x128xf32>
    %25 = vector.extract_strided_slice %16 {offsets = [0, 128], sizes = [8, 128], strides = [1, 1]} : vector<8x384xf32> to vector<8x128xf32>
    %26 = vector.extract_strided_slice %16 {offsets = [0, 256], sizes = [8, 128], strides = [1, 1]} : vector<8x384xf32> to vector<8x128xf32>
    %27 = vector.extract_strided_slice %23 {offsets = [0, 0], sizes = [8, 128], strides = [1, 1]} : vector<8x384xf32> to vector<8x128xf32>
    %28 = vector.extract_strided_slice %23 {offsets = [0, 128], sizes = [8, 128], strides = [1, 1]} : vector<8x384xf32> to vector<8x128xf32>
    %29 = vector.extract_strided_slice %23 {offsets = [0, 256], sizes = [8, 128], strides = [1, 1]} : vector<8x384xf32> to vector<8x128xf32>
    %30 = arith.addf %24, %27 : vector<8x128xf32>
    %31 = arith.negf %30 : vector<8x128xf32>
    %32 = math.exp %31 : vector<8x128xf32>
    %cst_20 = arith.constant 1.000000e+00 : f32
    %33 = vector.broadcast %cst_20 : f32 to vector<8x128xf32>
    %34 = arith.addf %33, %32 : vector<8x128xf32>
    %35 = arith.divf %33, %34 : vector<8x128xf32>
    %36 = arith.addf %25, %28 : vector<8x128xf32>
    %37 = arith.negf %36 : vector<8x128xf32>
    %38 = math.exp %37 : vector<8x128xf32>
    %cst_21 = arith.constant 1.000000e+00 : f32
    %39 = vector.broadcast %cst_21 : f32 to vector<8x128xf32>
    %40 = arith.addf %39, %38 : vector<8x128xf32>
    %41 = arith.divf %39, %40 : vector<8x128xf32>
    %42 = arith.mulf %35, %29 : vector<8x128xf32>
    %43 = arith.addf %26, %42 : vector<8x128xf32>
    %44 = math.tanh %43 : vector<8x128xf32>
    %cst_22 = arith.constant 1.000000e+00 : f32
    %45 = vector.broadcast %cst_22 : f32 to vector<8x128xf32>
    %46 = arith.subf %45, %41 : vector<8x128xf32>
    %47 = arith.mulf %46, %44 : vector<8x128xf32>
    %48 = arith.mulf %41, %9 : vector<8x128xf32>
    %49 = arith.addf %47, %48 : vector<8x128xf32>
    %c0_23 = arith.constant 0 : index
    %c0_24 = arith.constant 0 : index
    %c0_25 = arith.constant 0 : index
    %50 = vector.load %arg10[%c0_23, %c0_24, %c0_25] : memref<2x8x128xf32, #tpu.memory_space<vmem>>, vector<1x8x128xf32>
    %51 = vector.shape_cast %50 : vector<1x8x128xf32> to vector<8x128xf32>
    %52 = vector.shape_cast %49 : vector<8x128xf32> to vector<1x8x128xf32>
    tpu.vector_store %arg10[%c0_23, %c0_24, %c0_25], %52 {strides = array<i32>} : memref<2x8x128xf32, #tpu.memory_space<vmem>>, vector<1x8x128xf32>,
    %c1 = arith.constant 1 : index
    %c0_26 = arith.constant 0 : index
    %c0_27 = arith.constant 0 : index
    %53 = vector.load %arg2[%c1, %c0_26, %c0_27] : memref<2x8x128xf32, #tpu.memory_space<vmem>>, vector<1x8x128xf32>
    %54 = vector.shape_cast %53 : vector<1x8x128xf32> to vector<8x128xf32>
    %c1_28 = arith.constant 1 : index
    %c0_29 = arith.constant 0 : index
    %c0_30 = arith.constant 0 : index
    %55 = vector.load %arg3[%c1_28, %c0_29, %c0_30] : memref<2x128x384xf32, #tpu.memory_space<vmem>>, vector<1x128x384xf32>
    %56 = vector.shape_cast %55 : vector<1x128x384xf32> to vector<128x384xf32>
    %cst_31 = arith.constant dense<0.000000e+00> : vector<8x384xf32>
    %57 = tpu.matmul %49, %56, %cst_31 {dimension_numbers = #tpu.dot_dimension_numbers<[1], [0], [0], [1], [0, 0, 1, 1], [], []>} : vector<8x128xf32>, vector<128x384xf32>, vector<8x384xf32> -> vector<8x384xf32>
    %c1_32 = arith.constant 1 : index
    %c0_33 = arith.constant 0 : index
    %c0_34 = arith.constant 0 : index
    %58 = vector.load %arg5[%c1_32, %c0_33, %c0_34] : memref<2x1x384xf32, #tpu.memory_space<vmem>>, vector<1x1x384xf32>
    %59 = vector.shape_cast %58 : vector<1x1x384xf32> to vector<1x384xf32>
    %60 = vector.broadcast %59 : vector<1x384xf32> to vector<8x384xf32>
    %61 = arith.addf %57, %60 : vector<8x384xf32>
    %c1_35 = arith.constant 1 : index
    %c0_36 = arith.constant 0 : index
    %c0_37 = arith.constant 0 : index
    %62 = vector.load %arg4[%c1_35, %c0_36, %c0_37] : memref<2x128x384xf32, #tpu.memory_space<vmem>>, vector<1x128x384xf32>
    %63 = vector.shape_cast %62 : vector<1x128x384xf32> to vector<128x384xf32>
    %cst_38 = arith.constant dense<0.000000e+00> : vector<8x384xf32>
    %64 = tpu.matmul %54, %63, %cst_38 {dimension_numbers = #tpu.dot_dimension_numbers<[1], [0], [0], [1], [0, 0, 1, 1], [], []>} : vector<8x128xf32>, vector<128x384xf32>, vector<8x384xf32> -> vector<8x384xf32>
    %c1_39 = arith.constant 1 : index
    %c0_40 = arith.constant 0 : index
    %c0_41 = arith.constant 0 : index
    %65 = vector.load %arg6[%c1_39, %c0_40, %c0_41] : memref<2x1x384xf32, #tpu.memory_space<vmem>>, vector<1x1x384xf32>
    %66 = vector.shape_cast %65 : vector<1x1x384xf32> to vector<1x384xf32>
    %67 = vector.broadcast %66 : vector<1x384xf32> to vector<8x384xf32>
    %68 = arith.addf %64, %67 : vector<8x384xf32>
    %69 = vector.extract_strided_slice %61 {offsets = [0, 0], sizes = [8, 128], strides = [1, 1]} : vector<8x384xf32> to vector<8x128xf32>
    %70 = vector.extract_strided_slice %61 {offsets = [0, 128], sizes = [8, 128], strides = [1, 1]} : vector<8x384xf32> to vector<8x128xf32>
    %71 = vector.extract_strided_slice %61 {offsets = [0, 256], sizes = [8, 128], strides = [1, 1]} : vector<8x384xf32> to vector<8x128xf32>
    %72 = vector.extract_strided_slice %68 {offsets = [0, 0], sizes = [8, 128], strides = [1, 1]} : vector<8x384xf32> to vector<8x128xf32>
    %73 = vector.extract_strided_slice %68 {offsets = [0, 128], sizes = [8, 128], strides = [1, 1]} : vector<8x384xf32> to vector<8x128xf32>
    %74 = vector.extract_strided_slice %68 {offsets = [0, 256], sizes = [8, 128], strides = [1, 1]} : vector<8x384xf32> to vector<8x128xf32>
    %75 = arith.addf %69, %72 : vector<8x128xf32>
    %76 = arith.negf %75 : vector<8x128xf32>
    %77 = math.exp %76 : vector<8x128xf32>
    %cst_42 = arith.constant 1.000000e+00 : f32
    %78 = vector.broadcast %cst_42 : f32 to vector<8x128xf32>
    %79 = arith.addf %78, %77 : vector<8x128xf32>
    %80 = arith.divf %78, %79 : vector<8x128xf32>
    %81 = arith.addf %70, %73 : vector<8x128xf32>
    %82 = arith.negf %81 : vector<8x128xf32>
    %83 = math.exp %82 : vector<8x128xf32>
    %cst_43 = arith.constant 1.000000e+00 : f32
    %84 = vector.broadcast %cst_43 : f32 to vector<8x128xf32>
    %85 = arith.addf %84, %83 : vector<8x128xf32>
    %86 = arith.divf %84, %85 : vector<8x128xf32>
    %87 = arith.mulf %80, %74 : vector<8x128xf32>
    %88 = arith.addf %71, %87 : vector<8x128xf32>
    %89 = math.tanh %88 : vector<8x128xf32>
    %cst_44 = arith.constant 1.000000e+00 : f32
    %90 = vector.broadcast %cst_44 : f32 to vector<8x128xf32>
    %91 = arith.subf %90, %86 : vector<8x128xf32>
    %92 = arith.mulf %91, %89 : vector<8x128xf32>
    %93 = arith.mulf %86, %54 : vector<8x128xf32>
    %94 = arith.addf %92, %93 : vector<8x128xf32>
    %c1_45 = arith.constant 1 : index
    %c0_46 = arith.constant 0 : index
    %c0_47 = arith.constant 0 : index
    %95 = vector.load %arg10[%c1_45, %c0_46, %c0_47] : memref<2x8x128xf32, #tpu.memory_space<vmem>>, vector<1x8x128xf32>
    %96 = vector.shape_cast %95 : vector<1x8x128xf32> to vector<8x128xf32>
    %97 = vector.shape_cast %94 : vector<8x128xf32> to vector<1x8x128xf32>
    tpu.vector_store %arg10[%c1_45, %c0_46, %c0_47], %97 {strides = array<i32>} : memref<2x8x128xf32, #tpu.memory_space<vmem>>, vector<1x8x128xf32>,
    %c0_48 = arith.constant 0 : index
    %c0_49 = arith.constant 0 : index
    %98 = vector.load %arg7[%c0_48, %c0_49] : memref<128x128xf32, #tpu.memory_space<vmem>>, vector<128x128xf32>
    %cst_50 = arith.constant dense<0.000000e+00> : vector<8x128xf32>
    %99 = tpu.matmul %94, %98, %cst_50 {dimension_numbers = #tpu.dot_dimension_numbers<[1], [0], [0], [1], [0, 0, 1, 1], [], []>} : vector<8x128xf32>, vector<128x128xf32>, vector<8x128xf32> -> vector<8x128xf32>
    %c0_51 = arith.constant 0 : index
    %c0_52 = arith.constant 0 : index
    %100 = vector.load %arg8[%c0_51, %c0_52] : memref<1x128xf32, #tpu.memory_space<vmem>>, vector<1x128xf32>
    %101 = vector.broadcast %100 : vector<1x128xf32> to vector<8x128xf32>
    %102 = arith.addf %99, %101 : vector<8x128xf32>
    %c0_53 = arith.constant 0 : index
    %c0_54 = arith.constant 0 : index
    %103 = vector.load %arg9[%c0_53, %c0_54] : memref<8x128xf32, #tpu.memory_space<vmem>>, vector<8x128xf32>
    tpu.vector_store %arg9[%c0_53, %c0_54], %102 {strides = array<i32>} : memref<8x128xf32, #tpu.memory_space<vmem>>, vector<8x128xf32>,
    return
  }
}

</mosaic_0001>

<llo_original>
// kernel: tpu_custom_call.1
$region0: #{tpu_custom_call.1}
  #allocation0 [shape = 'u32[]', space=smem, size = 0x4, offset = 0x4, fixed_abs, tag = 'smem constant byte address 0x4 - core index']
  #allocation1 [shape = 'u32[72,128]{1,0:T(1,128)}', space=vmem, size = 0x9000, scoped, tag = 'internal scratch']
  %s0 = inlined_call_operand.vmem [shape: s32[8,1], index: 0, kind: input, shape index: {}]
  %s1 = inlined_call_operand.hbm [shape: f32[128,128], index: 1, kind: input, shape index: {}]
  %s2 = inlined_call_operand.hbm [shape: f32[2,8,128], index: 2, kind: input, shape index: {}]
  %s3 = inlined_call_operand.hbm [shape: f32[2,128,384], index: 3, kind: input, shape index: {}]
  %s4 = inlined_call_operand.hbm [shape: f32[2,128,384], index: 4, kind: input, shape index: {}]
  %s5 = inlined_call_operand.vmem [shape: f32[2,1,384], index: 5, kind: input, shape index: {}]
  %s6 = inlined_call_operand.vmem [shape: f32[2,1,384], index: 6, kind: input, shape index: {}]
  %s7 = inlined_call_operand.hbm [shape: f32[128,128], index: 7, kind: input, shape index: {}]
  %s8 = inlined_call_operand.vmem [shape: f32[1,128], index: 8, kind: input, shape index: {}]
  %s9 = inlined_call_operand.hbm [shape: f32[8,128], index: 9, kind: output, shape index: {0}]
  %s10 = inlined_call_operand.hbm [shape: f32[2,8,128], index: 10, kind: output, shape index: {1}]
  %11 = xla_tuple %s9, %s10
  %s12 = sld [smem:[#allocation0]]
  $region74: #{tpu_custom_call.1} parent=0
    _
  %s14 = ssub.s32 1, %s12
  %s15 = scalar_select 0, %s14, %s12
  $region1: #{tpu_custom_call.1} parent=0
    #allocation2 [shape = 'u8[65536]{0}', space=vmem, size = 0x10000, scoped, tag = 'input window, operand 1, single buffered']
    #allocation3 [shape = 's32[1]{0}', space=sflag, size = 0x4, scoped, tag = 'scoped memory for tpu_custom_call.1']
    #allocation4 [shape = 's32[1]{0}', space=sflag, size = 0x4, scoped, tag = 'scoped memory for tpu_custom_call.1']
    #allocation5 [shape = 'u8[8192]{0}', space=vmem, size = 0x2000, scoped, tag = 'input window, operand 2, single buffered']
    #allocation6 [shape = 's32[1]{0}', space=sflag, size = 0x4, scoped, tag = 'scoped memory for tpu_custom_call.1']
    #allocation7 [shape = 'u8[393216]{0}', space=vmem, size = 0x60000, scoped, tag = 'input window, operand 3, single buffered']
    #allocation8 [shape = 'u8[393216]{0}', space=vmem, size = 0x60000, scoped, tag = 'input window, operand 4, single buffered']
    #allocation9 [shape = 's32[1]{0}', space=sflag, size = 0x4, scoped, tag = 'scoped memory for tpu_custom_call.1']
    #allocation10 [shape = 'u8[65536]{0}', space=vmem, size = 0x10000, scoped, tag = 'input window, operand 7, single buffered']
    #allocation11 [shape = 'u8[4096]{0}', space=vmem, size = 0x1000, scoped, tag = 'output window, operand 0, single buffered']
    #allocation12 [shape = 'u8[8192]{0}', space=vmem, size = 0x2000, scoped, tag = 'output window, operand 1, single buffered']
    #allocation13 [shape = 's32[1]{0}', space=sflag, size = 0x4, scoped, tag = 'scoped memory for tpu_custom_call.1']
    %16 = vsyncpa [#allocation3], 0
    %17 = vsyncpa [#allocation6], 0
    %18 = vsyncpa [#allocation9], 0
    %19 = vsyncpa [#allocation4], 0
    %20 = vsyncpa [#allocation13], 0
    // Predicated region
    $region2: #{tpu_custom_call.1} parent=1 // pred_check
      _
    $region3: #{tpu_custom_call.1} parent=1 // pred_check_branch
      %22 = sbr.rel (0) target = $region5
    $region4: #{tpu_custom_call.1} parent=1 // pred_region
      _
    $region5: #{tpu_custom_call.1} parent=1 // pred_fallthru
      _
    // Predicated region
    $region6: #{tpu_custom_call.1} parent=1 // pred_check
      _
    $region7: #{tpu_custom_call.1} parent=1 // pred_check_branch
      %24 = sbr.rel (0) target = $region9
    $region8: #{tpu_custom_call.1} parent=1 // pred_region
      %26 = vsyncadd [#allocation3], 0
      %s27 = sshll.u32 %s1, 4
      %s28 = int_to_ptr.hbm [resolvable:$true] %s27
      %s29 = sshll.u32 [#allocation2], 4
      %s30 = int_to_ptr.vmem [resolvable:$true] %s29
      %35 = dma.hbm_to_vmem [thread:$0]  %s28, 2048, %s30, [#allocation3], 128, 128, 8
    $region9: #{tpu_custom_call.1} parent=1 // pred_fallthru
      _
    // Predicated region
    $region10: #{tpu_custom_call.1} parent=1 // pred_check
      _
    $region11: #{tpu_custom_call.1} parent=1 // pred_check_branch
      %37 = sbr.rel (0) target = $region13
    $region12: #{tpu_custom_call.1} parent=1 // pred_region
      %39 = vsyncadd [#allocation6], 0
      %s40 = sshll.u32 %s2, 4
      %s41 = int_to_ptr.hbm [resolvable:$true] %s40
      %s42 = sshll.u32 [#allocation5], 4
      %s43 = int_to_ptr.vmem [resolvable:$true] %s42
      %48 = dma.hbm_to_vmem [thread:$0]  %s41, 256, %s43, [#allocation6], 128, 128, 8
    $region13: #{tpu_custom_call.1} parent=1 // pred_fallthru
      _
    // Predicated region
    $region14: #{tpu_custom_call.1} parent=1 // pred_check
      _
    $region15: #{tpu_custom_call.1} parent=1 // pred_check_branch
      %50 = sbr.rel (0) target = $region17
    $region16: #{tpu_custom_call.1} parent=1 // pred_region
      %52 = vsyncadd [#allocation6], 0
      %s53 = sshll.u32 %s3, 4
      %s54 = int_to_ptr.hbm [resolvable:$true] %s53
      %s55 = sshll.u32 [#allocation7], 4
      %s56 = int_to_ptr.vmem [resolvable:$true] %s55
      %61 = dma.hbm_to_vmem [thread:$0]  %s54, 12288, %s56, [#allocation6], 384, 384, 24
    $region17: #{tpu_custom_call.1} parent=1 // pred_fallthru
      _
    // Predicated region
    $region18: #{tpu_custom_call.1} parent=1 // pred_check
      _
    $region19: #{tpu_custom_call.1} parent=1 // pred_check_branch
      %63 = sbr.rel (0) target = $region21
    $region20: #{tpu_custom_call.1} parent=1 // pred_region
      %65 = vsyncadd [#allocation9], 0
      %s66 = sshll.u32 %s4, 4
      %s67 = int_to_ptr.hbm [resolvable:$true] %s66
      %s68 = sshll.u32 [#allocation8], 4
      %s69 = int_to_ptr.vmem [resolvable:$true] %s68
      %74 = dma.hbm_to_vmem [thread:$0]  %s67, 12288, %s69, [#allocation9], 384, 384, 24
    $region21: #{tpu_custom_call.1} parent=1 // pred_fallthru
      _
    // Predicated region
    $region22: #{tpu_custom_call.1} parent=1 // pred_check
      _
    $region23: #{tpu_custom_call.1} parent=1 // pred_check_branch
      %76 = sbr.rel (0) target = $region25
    $region24: #{tpu_custom_call.1} parent=1 // pred_region
      _
    $region25: #{tpu_custom_call.1} parent=1 // pred_fallthru
      _
    // Predicated region
    $region26: #{tpu_custom_call.1} parent=1 // pred_check
      _
    $region27: #{tpu_custom_call.1} parent=1 // pred_check_branch
      %78 = sbr.rel (0) target = $region29
    $region28: #{tpu_custom_call.1} parent=1 // pred_region
      _
    $region29: #{tpu_custom_call.1} parent=1 // pred_fallthru
      _
    // Predicated region
    $region30: #{tpu_custom_call.1} parent=1 // pred_check
      _
    $region31: #{tpu_custom_call.1} parent=1 // pred_check_branch
      %80 = sbr.rel (0) target = $region33
    $region32: #{tpu_custom_call.1} parent=1 // pred_region
      %82 = vsyncadd [#allocation9], 0
      %s83 = sshll.u32 %s7, 4
      %s84 = int_to_ptr.hbm [resolvable:$true] %s83
      %s85 = sshll.u32 [#allocation10], 4
      %s86 = int_to_ptr.vmem [resolvable:$true] %s85
      %91 = dma.hbm_to_vmem [thread:$0]  %s84, 2048, %s86, [#allocation9], 128, 128, 8
    $region33: #{tpu_custom_call.1} parent=1 // pred_fallthru
      _
    // Predicated region
    $region34: #{tpu_custom_call.1} parent=1 // pred_check
      _
    $region35: #{tpu_custom_call.1} parent=1 // pred_check_branch
      %93 = sbr.rel (0) target = $region37
    $region36: #{tpu_custom_call.1} parent=1 // pred_region
      _
    $region37: #{tpu_custom_call.1} parent=1 // pred_fallthru
      _
    // Predicated region
    $region38: #{tpu_custom_call.1} parent=1 // pred_check
      _
    $region39: #{tpu_custom_call.1} parent=1 // pred_check_branch
      %95 = sbr.rel (0) target = $region41
    $region40: #{tpu_custom_call.1} parent=1 // pred_region
      %97 = dma.done [#allocation3], 2048
    $region41: #{tpu_custom_call.1} parent=1 // pred_fallthru
      _
    // Predicated region
    $region42: #{tpu_custom_call.1} parent=1 // pred_check
      _
    $region43: #{tpu_custom_call.1} parent=1 // pred_check_branch
      %99 = sbr.rel (0) target = $region45
    $region44: #{tpu_custom_call.1} parent=1 // pred_region
      %101 = dma.done [#allocation6], 256
    $region45: #{tpu_custom_call.1} parent=1 // pred_fallthru
      _
    // Predicated region
    $region46: #{tpu_custom_call.1} parent=1 // pred_check
      _
    $region47: #{tpu_custom_call.1} parent=1 // pred_check_branch
      %103 = sbr.rel (0) target = $region49
    $region48: #{tpu_custom_call.1} parent=1 // pred_region
      %105 = dma.done [#allocation6], 12288
    $region49: #{tpu_custom_call.1} parent=1 // pred_fallthru
      _
    // Predicated region
    $region50: #{tpu_custom_call.1} parent=1 // pred_check
      _
    $region51: #{tpu_custom_call.1} parent=1 // pred_check_branch
      %107 = sbr.rel (0) target = $region53
    $region52: #{tpu_custom_call.1} parent=1 // pred_region
      %109 = dma.done [#allocation9], 12288
    $region53: #{tpu_custom_call.1} parent=1 // pred_fallthru
      _
    // Predicated region
    $region54: #{tpu_custom_call.1} parent=1 // pred_check
      _
    $region55: #{tpu_custom_call.1} parent=1 // pred_check_branch
      %111 = sbr.rel (0) target = $region57
    $region56: #{tpu_custom_call.1} parent=1 // pred_region
      %113 = dma.done [#allocation9], 2048
    $region57: #{tpu_custom_call.1} parent=1 // pred_fallthru
      _
    %v114 = vld [vmem:[%s0] sm:$0xff]
    %v115 = vlaneseq
    %v116 = vand.u32 %v115, 127
    %117 = vset.pattern.permute.xlu0 0
    %118 = vperm.xlu0 %117, %v114
    %v119 = vpop.permute.xlu0 %118
    %vm120 = vcmp.eq.s32.totalorder %v116, %v119
    %v121 = vsel %vm120, 1, 0
    %v122 = vcvt.s32.f32 %v121
    %v123 = vld [vmem:[#allocation2] sm:$0xff]
    %v124 = vld [vmem:[#allocation2 + $0x8] sm:$0xff]
    %v125 = vld [vmem:[#allocation2 + $0x10] sm:$0xff]
    %v126 = vld [vmem:[#allocation2 + $0x18] sm:$0xff]
    %v127 = vld [vmem:[#allocation2 + $0x20] sm:$0xff]
    %v128 = vld [vmem:[#allocation2 + $0x28] sm:$0xff]
    %v129 = vld [vmem:[#allocation2 + $0x30] sm:$0xff]
    %v130 = vld [vmem:[#allocation2 + $0x38] sm:$0xff]
    %v131 = vld [vmem:[#allocation2 + $0x40] sm:$0xff]
    %v132 = vld [vmem:[#allocation2 + $0x48] sm:$0xff]
    %v133 = vld [vmem:[#allocation2 + $0x50] sm:$0xff]
    %v134 = vld [vmem:[#allocation2 + $0x58] sm:$0xff]
    %v135 = vld [vmem:[#allocation2 + $0x60] sm:$0xff]
    %v136 = vld [vmem:[#allocation2 + $0x68] sm:$0xff]
    %v137 = vld [vmem:[#allocation2 + $0x70] sm:$0xff]
    %v138 = vld [vmem:[#allocation2 + $0x78] sm:$0xff]
    %139 = vmatpush.msra.mxu0 %v138
    %140 = vmatpush.msra.mxu0 %v137
    %141 = vmatpush.msra.mxu0 %v136
    %142 = vmatpush.msra.mxu0 %v135
    %143 = vmatpush.msra.mxu0 %v134
    %144 = vmatpush.msra.mxu0 %v133
    %145 = vmatpush.msra.mxu0 %v132
    %146 = vmatpush.msra.mxu0 %v131
    %147 = vmatpush.msra.mxu0 %v130
    %148 = vmatpush.msra.mxu0 %v129
    %149 = vmatpush.msra.mxu0 %v128
    %150 = vmatpush.msra.mxu0 %v127
    %151 = vmatpush.msra.mxu0 %v126
    %152 = vmatpush.msra.mxu0 %v125
    %153 = vmatpush.msra.mxu0 %v124
    %154 = vmatpush.msra.mxu0 %v123
    %155 = vmatmul.f32.gmra.mxu0 %v122
    %v156 = vpop.f32.mrf.mxu0
    %v157 = vadd.f32 0.0, %v156
    %158 = vdwg.mxu0
    %v159 = vld [vmem:[#allocation5] sm:$0xff]
    %v160 = vld [vmem:[#allocation7] sm:$0xff]
    %v161 = vld [vmem:[#allocation7 + $0x8] sm:$0xff]
    %v162 = vld [vmem:[#allocation7 + $0x10] sm:$0xff]
    %v163 = vld [vmem:[#allocation7 + $0x18] sm:$0xff]
    %v164 = vld [vmem:[#allocation7 + $0x20] sm:$0xff]
    %v165 = vld [vmem:[#allocation7 + $0x28] sm:$0xff]
    %v166 = vld [vmem:[#allocation7 + $0x30] sm:$0xff]
    %v167 = vld [vmem:[#allocation7 + $0x38] sm:$0xff]
    %v168 = vld [vmem:[#allocation7 + $0x40] sm:$0xff]
    %v169 = vld [vmem:[#allocation7 + $0x48] sm:$0xff]
    %v170 = vld [vmem:[#allocation7 + $0x50] sm:$0xff]
    %v171 = vld [vmem:[#allocation7 + $0x58] sm:$0xff]
    %v172 = vld [vmem:[#allocation7 + $0x60] sm:$0xff]
    %v173 = vld [vmem:[#allocation7 + $0x68] sm:$0xff]
    %v174 = vld [vmem:[#allocation7 + $0x70] sm:$0xff]
    %v175 = vld [vmem:[#allocation7 + $0x78] sm:$0xff]
    %v176 = vld [vmem:[#allocation7 + $0x80] sm:$0xff]
    %v177 = vld [vmem:[#allocation7 + $0x88] sm:$0xff]
    %v178 = vld [vmem:[#allocation7 + $0x90] sm:$0xff]
    %v179 = vld [vmem:[#allocation7 + $0x98] sm:$0xff]
    %v180 = vld [vmem:[#allocation7 + $0xa0] sm:$0xff]
    %v181 = vld [vmem:[#allocation7 + $0xa8] sm:$0xff]
    %v182 = vld [vmem:[#allocation7 + $0xb0] sm:$0xff]
    %v183 = vld [vmem:[#allocation7 + $0xb8] sm:$0xff]
    %v184 = vld [vmem:[#allocation7 + $0xc0] sm:$0xff]
    %v185 = vld [vmem:[#allocation7 + $0xc8] sm:$0xff]
    %v186 = vld [vmem:[#allocation7 + $0xd0] sm:$0xff]
    %v187 = vld [vmem:[#allocation7 + $0xd8] sm:$0xff]
    %v188 = vld [vmem:[#allocation7 + $0xe0] sm:$0xff]
    %v189 = vld [vmem:[#allocation7 + $0xe8] sm:$0xff]
    %v190 = vld [vmem:[#allocation7 + $0xf0] sm:$0xff]
    %v191 = vld [vmem:[#allocation7 + $0xf8] sm:$0xff]
    %v192 = vld [vmem:[#allocation7 + $0x100] sm:$0xff]
    %v193 = vld [vmem:[#allocation7 + $0x108] sm:$0xff]
    %v194 = vld [vmem:[#allocation7 + $0x110] sm:$0xff]
    %v195 = vld [vmem:[#allocation7 + $0x118] sm:$0xff]
    %v196 = vld [vmem:[#allocation7 + $0x120] sm:$0xff]
    %v197 = vld [vmem:[#allocation7 + $0x128] sm:$0xff]
    %v198 = vld [vmem:[#allocation7 + $0x130] sm:$0xff]
    %v199 = vld [vmem:[#allocation7 + $0x138] sm:$0xff]
    %v200 = vld [vmem:[#allocation7 + $0x140] sm:$0xff]
    %v201 = vld [vmem:[#allocation7 + $0x148] sm:$0xff]
    %v202 = vld [vmem:[#allocation7 + $0x150] sm:$0xff]
    %v203 = vld [vmem:[#allocation7 + $0x158] sm:$0xff]
    %v204 = vld [vmem:[#allocation7 + $0x160] sm:$0xff]
    %v205 = vld [vmem:[#allocation7 + $0x168] sm:$0xff]
    %v206 = vld [vmem:[#allocation7 + $0x170] sm:$0xff]
    %v207 = vld [vmem:[#allocation7 + $0x178] sm:$0xff]
    %v208 = vld [vmem:[%s5] sm:$0x7]
    %v210 = vperm.slane %v208, 0
    %v211 = vperm.slane %v208, 1
    %v212 = vperm.slane %v208, 2
    %216 = vmatpush.msra.mxu0 %v205
    %217 = vmatpush.msra.mxu0 %v202
    %218 = vmatpush.msra.mxu0 %v199
    %219 = vmatpush.msra.mxu0 %v196
    %220 = vmatpush.msra.mxu0 %v193
    %221 = vmatpush.msra.mxu0 %v190
    %222 = vmatpush.msra.mxu0 %v187
    %223 = vmatpush.msra.mxu0 %v184
    %224 = vmatpush.msra.mxu0 %v181
    %225 = vmatpush.msra.mxu0 %v178
    %226 = vmatpush.msra.mxu0 %v175
    %227 = vmatpush.msra.mxu0 %v172
    %228 = vmatpush.msra.mxu0 %v169
    %229 = vmatpush.msra.mxu0 %v166
    %230 = vmatpush.msra.mxu0 %v163
    %231 = vmatpush.msra.mxu0 %v160
    %232 = vmatmul.f32.gmra.mxu0 %v157
    %v233 = vpop.f32.mrf.mxu0
    %v234 = vadd.f32 %v210, %v233
    %235 = vdwg.mxu0
    %236 = vmatpush.msra.mxu0 %v206
    %237 = vmatpush.msra.mxu0 %v203
    %238 = vmatpush.msra.mxu0 %v200
    %239 = vmatpush.msra.mxu0 %v197
    %240 = vmatpush.msra.mxu0 %v194
    %241 = vmatpush.msra.mxu0 %v191
    %242 = vmatpush.msra.mxu0 %v188
    %243 = vmatpush.msra.mxu0 %v185
    %244 = vmatpush.msra.mxu0 %v182
    %245 = vmatpush.msra.mxu0 %v179
    %246 = vmatpush.msra.mxu0 %v176
    %247 = vmatpush.msra.mxu0 %v173
    %248 = vmatpush.msra.mxu0 %v170
    %249 = vmatpush.msra.mxu0 %v167
    %250 = vmatpush.msra.mxu0 %v164
    %251 = vmatpush.msra.mxu0 %v161
    %252 = vmatmul.f32.gmra.mxu0 %v157
    %v253 = vpop.f32.mrf.mxu0
    %v254 = vadd.f32 %v211, %v253
    %255 = vdwg.mxu0
    %256 = vmatpush.msra.mxu0 %v207
    %257 = vmatpush.msra.mxu0 %v204
    %258 = vmatpush.msra.mxu0 %v201
    %259 = vmatpush.msra.mxu0 %v198
    %260 = vmatpush.msra.mxu0 %v195
    %261 = vmatpush.msra.mxu0 %v192
    %262 = vmatpush.msra.mxu0 %v189
    %263 = vmatpush.msra.mxu0 %v186
    %264 = vmatpush.msra.mxu0 %v183
    %265 = vmatpush.msra.mxu0 %v180
    %266 = vmatpush.msra.mxu0 %v177
    %267 = vmatpush.msra.mxu0 %v174
    %268 = vmatpush.msra.mxu0 %v171
    %269 = vmatpush.msra.mxu0 %v168
    %270 = vmatpush.msra.mxu0 %v165
    %271 = vmatpush.msra.mxu0 %v162
    %272 = vmatmul.f32.gmra.mxu0 %v157
    %v273 = vpop.f32.mrf.mxu0
    %v274 = vadd.f32 %v212, %v273
    %275 = vdwg.mxu0
    %v276 = vld [vmem:[#allocation8] sm:$0xff]
    %v277 = vld [vmem:[#allocation8 + $0x8] sm:$0xff]
    %v278 = vld [vmem:[#allocation8 + $0x10] sm:$0xff]
    %v279 = vld [vmem:[#allocation8 + $0x18] sm:$0xff]
    %v280 = vld [vmem:[#allocation8 + $0x20] sm:$0xff]
    %v281 = vld [vmem:[#allocation8 + $0x28] sm:$0xff]
    %v282 = vld [vmem:[#allocation8 + $0x30] sm:$0xff]
    %v283 = vld [vmem:[#allocation8 + $0x38] sm:$0xff]
    %v284 = vld [vmem:[#allocation8 + $0x40] sm:$0xff]
    %v285 = vld [vmem:[#allocation8 + $0x48] sm:$0xff]
    %v286 = vld [vmem:[#allocation8 + $0x50] sm:$0xff]
    %v287 = vld [vmem:[#allocation8 + $0x58] sm:$0xff]
    %v288 = vld [vmem:[#allocation8 + $0x60] sm:$0xff]
    %v289 = vld [vmem:[#allocation8 + $0x68] sm:$0xff]
    %v290 = vld [vmem:[#allocation8 + $0x70] sm:$0xff]
    %v291 = vld [vmem:[#allocation8 + $0x78] sm:$0xff]
    %v292 = vld [vmem:[#allocation8 + $0x80] sm:$0xff]
    %v293 = vld [vmem:[#allocation8 + $0x88] sm:$0xff]
    %v294 = vld [vmem:[#allocation8 + $0x90] sm:$0xff]
    %v295 = vld [vmem:[#allocation8 + $0x98] sm:$0xff]
    %v296 = vld [vmem:[#allocation8 + $0xa0] sm:$0xff]
    %v297 = vld [vmem:[#allocation8 + $0xa8] sm:$0xff]
    %v298 = vld [vmem:[#allocation8 + $0xb0] sm:$0xff]
    %v299 = vld [vmem:[#allocation8 + $0xb8] sm:$0xff]
    %v300 = vld [vmem:[#allocation8 + $0xc0] sm:$0xff]
    %v301 = vld [vmem:[#allocation8 + $0xc8] sm:$0xff]
    %v302 = vld [vmem:[#allocation8 + $0xd0] sm:$0xff]
    %v303 = vld [vmem:[#allocation8 + $0xd8] sm:$0xff]
    %v304 = vld [vmem:[#allocation8 + $0xe0] sm:$0xff]
    %v305 = vld [vmem:[#allocation8 + $0xe8] sm:$0xff]
    %v306 = vld [vmem:[#allocation8 + $0xf0] sm:$0xff]
    %v307 = vld [vmem:[#allocation8 + $0xf8] sm:$0xff]
    %v308 = vld [vmem:[#allocation8 + $0x100] sm:$0xff]
    %v309 = vld [vmem:[#allocation8 + $0x108] sm:$0xff]
    %v310 = vld [vmem:[#allocation8 + $0x110] sm:$0xff]
    %v311 = vld [vmem:[#allocation8 + $0x118] sm:$0xff]
    %v312 = vld [vmem:[#allocation8 + $0x120] sm:$0xff]
    %v313 = vld [vmem:[#allocation8 + $0x128] sm:$0xff]
    %v314 = vld [vmem:[#allocation8 + $0x130] sm:$0xff]
    %v315 = vld [vmem:[#allocation8 + $0x138] sm:$0xff]
    %v316 = vld [vmem:[#allocation8 + $0x140] sm:$0xff]
    %v317 = vld [vmem:[#allocation8 + $0x148] sm:$0xff]
    %v318 = vld [vmem:[#allocation8 + $0x150] sm:$0xff]
    %v319 = vld [vmem:[#allocation8 + $0x158] sm:$0xff]
    %v320 = vld [vmem:[#allocation8 + $0x160] sm:$0xff]
    %v321 = vld [vmem:[#allocation8 + $0x168] sm:$0xff]
    %v322 = vld [vmem:[#allocation8 + $0x170] sm:$0xff]
    %v323 = vld [vmem:[#allocation8 + $0x178] sm:$0xff]
    %v324 = vld [vmem:[%s6] sm:$0x7]
    %v326 = vperm.slane %v324, 0
    %v327 = vperm.slane %v324, 1
    %v328 = vperm.slane %v324, 2
    %332 = vmatpush.msra.mxu0 %v321
    %333 = vmatpush.msra.mxu0 %v318
    %334 = vmatpush.msra.mxu0 %v315
    %335 = vmatpush.msra.mxu0 %v312
    %336 = vmatpush.msra.mxu0 %v309
    %337 = vmatpush.msra.mxu0 %v306
    %338 = vmatpush.msra.mxu0 %v303
    %339 = vmatpush.msra.mxu0 %v300
    %340 = vmatpush.msra.mxu0 %v297
    %341 = vmatpush.msra.mxu0 %v294
    %342 = vmatpush.msra.mxu0 %v291
    %343 = vmatpush.msra.mxu0 %v288
    %344 = vmatpush.msra.mxu0 %v285
    %345 = vmatpush.msra.mxu0 %v282
    %346 = vmatpush.msra.mxu0 %v279
    %347 = vmatpush.msra.mxu0 %v276
    %348 = vmatmul.f32.gmra.mxu0 %v159
    %v349 = vpop.f32.mrf.mxu0
    %v350 = vadd.f32 %v326, %v349
    %351 = vdwg.mxu0
    %352 = vmatpush.msra.mxu0 %v322
    %353 = vmatpush.msra.mxu0 %v319
    %354 = vmatpush.msra.mxu0 %v316
    %355 = vmatpush.msra.mxu0 %v313
    %356 = vmatpush.msra.mxu0 %v310
    %357 = vmatpush.msra.mxu0 %v307
    %358 = vmatpush.msra.mxu0 %v304
    %359 = vmatpush.msra.mxu0 %v301
    %360 = vmatpush.msra.mxu0 %v298
    %361 = vmatpush.msra.mxu0 %v295
    %362 = vmatpush.msra.mxu0 %v292
    %363 = vmatpush.msra.mxu0 %v289
    %364 = vmatpush.msra.mxu0 %v286
    %365 = vmatpush.msra.mxu0 %v283
    %366 = vmatpush.msra.mxu0 %v280
    %367 = vmatpush.msra.mxu0 %v277
    %368 = vmatmul.f32.gmra.mxu0 %v159
    %v369 = vpop.f32.mrf.mxu0
    %v370 = vadd.f32 %v327, %v369
    %371 = vdwg.mxu0
    %372 = vmatpush.msra.mxu0 %v323
    %373 = vmatpush.msra.mxu0 %v320
    %374 = vmatpush.msra.mxu0 %v317
    %375 = vmatpush.msra.mxu0 %v314
    %376 = vmatpush.msra.mxu0 %v311
    %377 = vmatpush.msra.mxu0 %v308
    %378 = vmatpush.msra.mxu0 %v305
    %379 = vmatpush.msra.mxu0 %v302
    %380 = vmatpush.msra.mxu0 %v299
    %381 = vmatpush.msra.mxu0 %v296
    %382 = vmatpush.msra.mxu0 %v293
    %383 = vmatpush.msra.mxu0 %v290
    %384 = vmatpush.msra.mxu0 %v287
    %385 = vmatpush.msra.mxu0 %v284
    %386 = vmatpush.msra.mxu0 %v281
    %387 = vmatpush.msra.mxu0 %v278
    %388 = vmatmul.f32.gmra.mxu0 %v159
    %v389 = vpop.f32.mrf.mxu0
    %v390 = vadd.f32 %v328, %v389
    %391 = vdwg.mxu0
    %v392 = vadd.f32 %v234, %v350
    %v393 = vxor.u32 %v392, 2147483648
    %v394 = vmul.f32 %v393, 1.442695
    %v395 = vpow.pop %v394
    %v396 = vadd.f32 %v395, 1.0
    %v397 = vrcp.pop %v396
    %v398 = vmul.f32 %v396, %v397
    %v399 = vsub.f32 1.0, %v398
    %v400 = vmul.f32 %v397, %v399
    %v401 = vadd.f32 %v397, %v400
    %vm402 = vweird.f32 %v396
    %vm403 = vweird.f32 %v397
    %vm404 = vmor %vm402, %vm403
    %v405 = vsel %vm404, %v397, %v401
    %v406 = vand.u32 2147483647, %v396
    %vm407 = vcmp.eq.f32.partialorder %v406, 8.507059e+37
    %v408 = vand.u32 %v396, 2147483648
    %v409 = vor.u32 1.1754944e-38, %v408
    %v410 = vsel %vm407, %v409, %v405
    %v411 = vmul.f32 1.0, %v410
    %v412 = vadd.f32 %v254, %v370
    %v413 = vxor.u32 %v412, 2147483648
    %v414 = vmul.f32 %v413, 1.442695
    %v415 = vpow.pop %v414
    %v416 = vadd.f32 %v415, 1.0
    %v417 = vrcp.pop %v416
    %v418 = vmul.f32 %v416, %v417
    %v419 = vsub.f32 1.0, %v418
    %v420 = vmul.f32 %v417, %v419
    %v421 = vadd.f32 %v417, %v420
    %vm422 = vweird.f32 %v416
    %vm423 = vweird.f32 %v417
    %vm424 = vmor %vm422, %vm423
    %v425 = vsel %vm424, %v417, %v421
    %v426 = vand.u32 2147483647, %v416
    %vm427 = vcmp.eq.f32.partialorder %v426, 8.507059e+37
    %v428 = vand.u32 %v416, 2147483648
    %v429 = vor.u32 1.1754944e-38, %v428
    %v430 = vsel %vm427, %v429, %v425
    %v431 = vmul.f32 1.0, %v430
    %v432 = vmul.f32 %v411, %v390
    %v433 = vadd.f32 %v274, %v432
    %v434 = vtanh.pop %v433
    %v435 = vsub.f32 1.0, %v431
    %v436 = vmul.f32 %v435, %v434
    %v437 = vmul.f32 %v431, %v159
    %v438 = vadd.f32 %v436, %v437
    %439 = vst [vmem:[#allocation12] sm:$0xff] %v438
    %s440 = scalar_lea.vmem [#allocation5], 8
    %v441 = vld [vmem:[%s440] sm:$0xff]
    %s442 = scalar_lea.vmem [#allocation7], 384
    %v443 = vld [vmem:[%s442] sm:$0xff]
    %v444 = vld [vmem:[%s442 + $0x8] sm:$0xff]
    %v445 = vld [vmem:[%s442 + $0x10] sm:$0xff]
    %v446 = vld [vmem:[%s442 + $0x18] sm:$0xff]
    %v447 = vld [vmem:[%s442 + $0x20] sm:$0xff]
    %v448 = vld [vmem:[%s442 + $0x28] sm:$0xff]
    %v449 = vld [vmem:[%s442 + $0x30] sm:$0xff]
    %v450 = vld [vmem:[%s442 + $0x38] sm:$0xff]
    %v451 = vld [vmem:[%s442 + $0x40] sm:$0xff]
    %v452 = vld [vmem:[%s442 + $0x48] sm:$0xff]
    %v453 = vld [vmem:[%s442 + $0x50] sm:$0xff]
    %v454 = vld [vmem:[%s442 + $0x58] sm:$0xff]
    %v455 = vld [vmem:[%s442 + $0x60] sm:$0xff]
    %v456 = vld [vmem:[%s442 + $0x68] sm:$0xff]
    %v457 = vld [vmem:[%s442 + $0x70] sm:$0xff]
    %v458 = vld [vmem:[%s442 + $0x78] sm:$0xff]
    %v459 = vld [vmem:[%s442 + $0x80] sm:$0xff]
    %v460 = vld [vmem:[%s442 + $0x88] sm:$0xff]
    %v461 = vld [vmem:[%s442 + $0x90] sm:$0xff]
    %v462 = vld [vmem:[%s442 + $0x98] sm:$0xff]
    %v463 = vld [vmem:[%s442 + $0xa0] sm:$0xff]
    %v464 = vld [vmem:[%s442 + $0xa8] sm:$0xff]
    %v465 = vld [vmem:[%s442 + $0xb0] sm:$0xff]
    %v466 = vld [vmem:[%s442 + $0xb8] sm:$0xff]
    %v467 = vld [vmem:[%s442 + $0xc0] sm:$0xff]
    %v468 = vld [vmem:[%s442 + $0xc8] sm:$0xff]
    %v469 = vld [vmem:[%s442 + $0xd0] sm:$0xff]
    %v470 = vld [vmem:[%s442 + $0xd8] sm:$0xff]
    %v471 = vld [vmem:[%s442 + $0xe0] sm:$0xff]
    %v472 = vld [vmem:[%s442 + $0xe8] sm:$0xff]
    %v473 = vld [vmem:[%s442 + $0xf0] sm:$0xff]
    %v474 = vld [vmem:[%s442 + $0xf8] sm:$0xff]
    %v475 = vld [vmem:[%s442 + $0x100] sm:$0xff]
    %v476 = vld [vmem:[%s442 + $0x108] sm:$0xff]
    %v477 = vld [vmem:[%s442 + $0x110] sm:$0xff]
    %v478 = vld [vmem:[%s442 + $0x118] sm:$0xff]
    %v479 = vld [vmem:[%s442 + $0x120] sm:$0xff]
    %v480 = vld [vmem:[%s442 + $0x128] sm:$0xff]
    %v481 = vld [vmem:[%s442 + $0x130] sm:$0xff]
    %v482 = vld [vmem:[%s442 + $0x138] sm:$0xff]
    %v483 = vld [vmem:[%s442 + $0x140] sm:$0xff]
    %v484 = vld [vmem:[%s442 + $0x148] sm:$0xff]
    %v485 = vld [vmem:[%s442 + $0x150] sm:$0xff]
    %v486 = vld [vmem:[%s442 + $0x158] sm:$0xff]
    %v487 = vld [vmem:[%s442 + $0x160] sm:$0xff]
    %v488 = vld [vmem:[%s442 + $0x168] sm:$0xff]
    %v489 = vld [vmem:[%s442 + $0x170] sm:$0xff]
    %v490 = vld [vmem:[%s442 + $0x178] sm:$0xff]
    %s491 = scalar_lea.vmem %s5, 3
    %v492 = vld [vmem:[%s491] sm:$0x7]
    %v494 = vperm.slane %v492, 0
    %v495 = vperm.slane %v492, 1
    %v496 = vperm.slane %v492, 2
    %500 = vmatpush.msra.mxu0 %v488
    %501 = vmatpush.msra.mxu0 %v485
    %502 = vmatpush.msra.mxu0 %v482
    %503 = vmatpush.msra.mxu0 %v479
    %504 = vmatpush.msra.mxu0 %v476
    %505 = vmatpush.msra.mxu0 %v473
    %506 = vmatpush.msra.mxu0 %v470
    %507 = vmatpush.msra.mxu0 %v467
    %508 = vmatpush.msra.mxu0 %v464
    %509 = vmatpush.msra.mxu0 %v461
    %510 = vmatpush.msra.mxu0 %v458
    %511 = vmatpush.msra.mxu0 %v455
    %512 = vmatpush.msra.mxu0 %v452
    %513 = vmatpush.msra.mxu0 %v449
    %514 = vmatpush.msra.mxu0 %v446
    %515 = vmatpush.msra.mxu0 %v443
    %516 = vmatmul.f32.gmra.mxu0 %v438
    %v517 = vpop.f32.mrf.mxu0
    %v518 = vadd.f32 %v494, %v517
    %519 = vdwg.mxu0
    %520 = vmatpush.msra.mxu0 %v489
    %521 = vmatpush.msra.mxu0 %v486
    %522 = vmatpush.msra.mxu0 %v483
    %523 = vmatpush.msra.mxu0 %v480
    %524 = vmatpush.msra.mxu0 %v477
    %525 = vmatpush.msra.mxu0 %v474
    %526 = vmatpush.msra.mxu0 %v471
    %527 = vmatpush.msra.mxu0 %v468
    %528 = vmatpush.msra.mxu0 %v465
    %529 = vmatpush.msra.mxu0 %v462
    %530 = vmatpush.msra.mxu0 %v459
    %531 = vmatpush.msra.mxu0 %v456
    %532 = vmatpush.msra.mxu0 %v453
    %533 = vmatpush.msra.mxu0 %v450
    %534 = vmatpush.msra.mxu0 %v447
    %535 = vmatpush.msra.mxu0 %v444
    %536 = vmatmul.f32.gmra.mxu0 %v438
    %v537 = vpop.f32.mrf.mxu0
    %v538 = vadd.f32 %v495, %v537
    %539 = vdwg.mxu0
    %540 = vmatpush.msra.mxu0 %v490
    %541 = vmatpush.msra.mxu0 %v487
    %542 = vmatpush.msra.mxu0 %v484
    %543 = vmatpush.msra.mxu0 %v481
    %544 = vmatpush.msra.mxu0 %v478
    %545 = vmatpush.msra.mxu0 %v475
    %546 = vmatpush.msra.mxu0 %v472
    %547 = vmatpush.msra.mxu0 %v469
    %548 = vmatpush.msra.mxu0 %v466
    %549 = vmatpush.msra.mxu0 %v463
    %550 = vmatpush.msra.mxu0 %v460
    %551 = vmatpush.msra.mxu0 %v457
    %552 = vmatpush.msra.mxu0 %v454
    %553 = vmatpush.msra.mxu0 %v451
    %554 = vmatpush.msra.mxu0 %v448
    %555 = vmatpush.msra.mxu0 %v445
    %556 = vmatmul.f32.gmra.mxu0 %v438
    %v557 = vpop.f32.mrf.mxu0
    %v558 = vadd.f32 %v496, %v557
    %559 = vdwg.mxu0
    %s560 = scalar_lea.vmem [#allocation8], 384
    %v561 = vld [vmem:[%s560] sm:$0xff]
    %v562 = vld [vmem:[%s560 + $0x8] sm:$0xff]
    %v563 = vld [vmem:[%s560 + $0x10] sm:$0xff]
    %v564 = vld [vmem:[%s560 + $0x18] sm:$0xff]
    %v565 = vld [vmem:[%s560 + $0x20] sm:$0xff]
    %v566 = vld [vmem:[%s560 + $0x28] sm:$0xff]
    %v567 = vld [vmem:[%s560 + $0x30] sm:$0xff]
    %v568 = vld [vmem:[%s560 + $0x38] sm:$0xff]
    %v569 = vld [vmem:[%s560 + $0x40] sm:$0xff]
    %v570 = vld [vmem:[%s560 + $0x48] sm:$0xff]
    %v571 = vld [vmem:[%s560 + $0x50] sm:$0xff]
    %v572 = vld [vmem:[%s560 + $0x58] sm:$0xff]
    %v573 = vld [vmem:[%s560 + $0x60] sm:$0xff]
    %v574 = vld [vmem:[%s560 + $0x68] sm:$0xff]
    %v575 = vld [vmem:[%s560 + $0x70] sm:$0xff]
    %v576 = vld [vmem:[%s560 + $0x78] sm:$0xff]
    %v577 = vld [vmem:[%s560 + $0x80] sm:$0xff]
    %v578 = vld [vmem:[%s560 + $0x88] sm:$0xff]
    %v579 = vld [vmem:[%s560 + $0x90] sm:$0xff]
    %v580 = vld [vmem:[%s560 + $0x98] sm:$0xff]
    %v581 = vld [vmem:[%s560 + $0xa0] sm:$0xff]
    %v582 = vld [vmem:[%s560 + $0xa8] sm:$0xff]
    %v583 = vld [vmem:[%s560 + $0xb0] sm:$0xff]
    %v584 = vld [vmem:[%s560 + $0xb8] sm:$0xff]
    %v585 = vld [vmem:[%s560 + $0xc0] sm:$0xff]
    %v586 = vld [vmem:[%s560 + $0xc8] sm:$0xff]
    %v587 = vld [vmem:[%s560 + $0xd0] sm:$0xff]
    %v588 = vld [vmem:[%s560 + $0xd8] sm:$0xff]
    %v589 = vld [vmem:[%s560 + $0xe0] sm:$0xff]
    %v590 = vld [vmem:[%s560 + $0xe8] sm:$0xff]
    %v591 = vld [vmem:[%s560 + $0xf0] sm:$0xff]
    %v592 = vld [vmem:[%s560 + $0xf8] sm:$0xff]
    %v593 = vld [vmem:[%s560 + $0x100] sm:$0xff]
    %v594 = vld [vmem:[%s560 + $0x108] sm:$0xff]
    %v595 = vld [vmem:[%s560 + $0x110] sm:$0xff]
    %v596 = vld [vmem:[%s560 + $0x118] sm:$0xff]
    %v597 = vld [vmem:[%s560 + $0x120] sm:$0xff]
    %v598 = vld [vmem:[%s560 + $0x128] sm:$0xff]
    %v599 = vld [vmem:[%s560 + $0x130] sm:$0xff]
    %v600 = vld [vmem:[%s560 + $0x138] sm:$0xff]
    %v601 = vld [vmem:[%s560 + $0x140] sm:$0xff]
    %v602 = vld [vmem:[%s560 + $0x148] sm:$0xff]
    %v603 = vld [vmem:[%s560 + $0x150] sm:$0xff]
    %v604 = vld [vmem:[%s560 + $0x158] sm:$0xff]
    %v605 = vld [vmem:[%s560 + $0x160] sm:$0xff]
    %v606 = vld [vmem:[%s560 + $0x168] sm:$0xff]
    %v607 = vld [vmem:[%s560 + $0x170] sm:$0xff]
    %v608 = vld [vmem:[%s560 + $0x178] sm:$0xff]
    %s609 = scalar_lea.vmem %s6, 3
    %v610 = vld [vmem:[%s609] sm:$0x7]
    %v612 = vperm.slane %v610, 0
    %v613 = vperm.slane %v610, 1
    %v614 = vperm.slane %v610, 2
    %618 = vmatpush.msra.mxu0 %v606
    %619 = vmatpush.msra.mxu0 %v603
    %620 = vmatpush.msra.mxu0 %v600
    %621 = vmatpush.msra.mxu0 %v597
    %622 = vmatpush.msra.mxu0 %v594
    %623 = vmatpush.msra.mxu0 %v591
    %624 = vmatpush.msra.mxu0 %v588
    %625 = vmatpush.msra.mxu0 %v585
    %626 = vmatpush.msra.mxu0 %v582
    %627 = vmatpush.msra.mxu0 %v579
    %628 = vmatpush.msra.mxu0 %v576
    %629 = vmatpush.msra.mxu0 %v573
    %630 = vmatpush.msra.mxu0 %v570
    %631 = vmatpush.msra.mxu0 %v567
    %632 = vmatpush.msra.mxu0 %v564
    %633 = vmatpush.msra.mxu0 %v561
    %634 = vmatmul.f32.gmra.mxu0 %v441
    %v635 = vpop.f32.mrf.mxu0
    %v636 = vadd.f32 %v612, %v635
    %637 = vdwg.mxu0
    %638 = vmatpush.msra.mxu0 %v607
    %639 = vmatpush.msra.mxu0 %v604
    %640 = vmatpush.msra.mxu0 %v601
    %641 = vmatpush.msra.mxu0 %v598
    %642 = vmatpush.msra.mxu0 %v595
    %643 = vmatpush.msra.mxu0 %v592
    %644 = vmatpush.msra.mxu0 %v589
    %645 = vmatpush.msra.mxu0 %v586
    %646 = vmatpush.msra.mxu0 %v583
    %647 = vmatpush.msra.mxu0 %v580
    %648 = vmatpush.msra.mxu0 %v577
    %649 = vmatpush.msra.mxu0 %v574
    %650 = vmatpush.msra.mxu0 %v571
    %651 = vmatpush.msra.mxu0 %v568
    %652 = vmatpush.msra.mxu0 %v565
    %653 = vmatpush.msra.mxu0 %v562
    %654 = vmatmul.f32.gmra.mxu0 %v441
    %v655 = vpop.f32.mrf.mxu0
    %v656 = vadd.f32 %v613, %v655
    %657 = vdwg.mxu0
    %658 = vmatpush.msra.mxu0 %v608
    %659 = vmatpush.msra.mxu0 %v605
    %660 = vmatpush.msra.mxu0 %v602
    %661 = vmatpush.msra.mxu0 %v599
    %662 = vmatpush.msra.mxu0 %v596
    %663 = vmatpush.msra.mxu0 %v593
    %664 = vmatpush.msra.mxu0 %v590
    %665 = vmatpush.msra.mxu0 %v587
    %666 = vmatpush.msra.mxu0 %v584
    %667 = vmatpush.msra.mxu0 %v581
    %668 = vmatpush.msra.mxu0 %v578
    %669 = vmatpush.msra.mxu0 %v575
    %670 = vmatpush.msra.mxu0 %v572
    %671 = vmatpush.msra.mxu0 %v569
    %672 = vmatpush.msra.mxu0 %v566
    %673 = vmatpush.msra.mxu0 %v563
    %674 = vmatmul.f32.gmra.mxu0 %v441
    %v675 = vpop.f32.mrf.mxu0
    %v676 = vadd.f32 %v614, %v675
    %677 = vdwg.mxu0
    %v678 = vadd.f32 %v518, %v636
    %v679 = vxor.u32 %v678, 2147483648
    %v680 = vmul.f32 %v679, 1.442695
    %v681 = vpow.pop %v680
    %v682 = vadd.f32 %v681, 1.0
    %v683 = vrcp.pop %v682
    %v684 = vmul.f32 %v682, %v683
    %v685 = vsub.f32 1.0, %v684
    %v686 = vmul.f32 %v683, %v685
    %v687 = vadd.f32 %v683, %v686
    %vm688 = vweird.f32 %v682
    %vm689 = vweird.f32 %v683
    %vm690 = vmor %vm688, %vm689
    %v691 = vsel %vm690, %v683, %v687
    %v692 = vand.u32 2147483647, %v682
    %vm693 = vcmp.eq.f32.partialorder %v692, 8.507059e+37
    %v694 = vand.u32 %v682, 2147483648
    %v695 = vor.u32 1.1754944e-38, %v694
    %v696 = vsel %vm693, %v695, %v691
    %v697 = vmul.f32 1.0, %v696
    %v698 = vadd.f32 %v538, %v656
    %v699 = vxor.u32 %v698, 2147483648
    %v700 = vmul.f32 %v699, 1.442695
    %v701 = vpow.pop %v700
    %v702 = vadd.f32 %v701, 1.0
    %v703 = vrcp.pop %v702
    %v704 = vmul.f32 %v702, %v703
    %v705 = vsub.f32 1.0, %v704
    %v706 = vmul.f32 %v703, %v705
    %v707 = vadd.f32 %v703, %v706
    %vm708 = vweird.f32 %v702
    %vm709 = vweird.f32 %v703
    %vm710 = vmor %vm708, %vm709
    %v711 = vsel %vm710, %v703, %v707
    %v712 = vand.u32 2147483647, %v702
    %vm713 = vcmp.eq.f32.partialorder %v712, 8.507059e+37
    %v714 = vand.u32 %v702, 2147483648
    %v715 = vor.u32 1.1754944e-38, %v714
    %v716 = vsel %vm713, %v715, %v711
    %v717 = vmul.f32 1.0, %v716
    %v718 = vmul.f32 %v697, %v676
    %v719 = vadd.f32 %v558, %v718
    %v720 = vtanh.pop %v719
    %v721 = vsub.f32 1.0, %v717
    %v722 = vmul.f32 %v721, %v720
    %v723 = vmul.f32 %v717, %v441
    %v724 = vadd.f32 %v722, %v723
    %s725 = scalar_lea.vmem [#allocation12], 8
    %726 = vst [vmem:[%s725] sm:$0xff] %v724
    %v727 = vld [vmem:[#allocation10] sm:$0xff]
    %v728 = vld [vmem:[#allocation10 + $0x8] sm:$0xff]
    %v729 = vld [vmem:[#allocation10 + $0x10] sm:$0xff]
    %v730 = vld [vmem:[#allocation10 + $0x18] sm:$0xff]
    %v731 = vld [vmem:[#allocation10 + $0x20] sm:$0xff]
    %v732 = vld [vmem:[#allocation10 + $0x28] sm:$0xff]
    %v733 = vld [vmem:[#allocation10 + $0x30] sm:$0xff]
    %v734 = vld [vmem:[#allocation10 + $0x38] sm:$0xff]
    %v735 = vld [vmem:[#allocation10 + $0x40] sm:$0xff]
    %v736 = vld [vmem:[#allocation10 + $0x48] sm:$0xff]
    %v737 = vld [vmem:[#allocation10 + $0x50] sm:$0xff]
    %v738 = vld [vmem:[#allocation10 + $0x58] sm:$0xff]
    %v739 = vld [vmem:[#allocation10 + $0x60] sm:$0xff]
    %v740 = vld [vmem:[#allocation10 + $0x68] sm:$0xff]
    %v741 = vld [vmem:[#allocation10 + $0x70] sm:$0xff]
    %v742 = vld [vmem:[#allocation10 + $0x78] sm:$0xff]
    %v743 = vld [vmem:[%s8] sm:$0x1]
    %v745 = vperm.slane %v743, 0
    %747 = vmatpush.msra.mxu0 %v742
    %748 = vmatpush.msra.mxu0 %v741
    %749 = vmatpush.msra.mxu0 %v740
    %750 = vmatpush.msra.mxu0 %v739
    %751 = vmatpush.msra.mxu0 %v738
    %752 = vmatpush.msra.mxu0 %v737
    %753 = vmatpush.msra.mxu0 %v736
    %754 = vmatpush.msra.mxu0 %v735
    %755 = vmatpush.msra.mxu0 %v734
    %756 = vmatpush.msra.mxu0 %v733
    %757 = vmatpush.msra.mxu0 %v732
    %758 = vmatpush.msra.mxu0 %v731
    %759 = vmatpush.msra.mxu0 %v730
    %760 = vmatpush.msra.mxu0 %v729
    %761 = vmatpush.msra.mxu0 %v728
    %762 = vmatpush.msra.mxu0 %v727
    %763 = vmatmul.f32.gmra.mxu0 %v724
    %v764 = vpop.f32.mrf.mxu0
    %v765 = vadd.f32 %v745, %v764
    %766 = vdwg.mxu0
    %767 = vst [vmem:[#allocation11] sm:$0xff] %v765
    // Predicated region
    $region58: #{tpu_custom_call.1} parent=1 // pred_check
      _
    $region59: #{tpu_custom_call.1} parent=1 // pred_check_branch
      %769 = sbr.rel (0) target = $region61
    $region60: #{tpu_custom_call.1} parent=1 // pred_region
      %771 = vsyncadd [#allocation4], 0
      %s773 = sshll.u32 [#allocation11], 4
      %s774 = int_to_ptr.vmem [resolvable:$true] %s773
      %s775 = sshll.u32 %s9, 4
      %s776 = int_to_ptr.hbm [resolvable:$true] %s775
      %778 = dma.vmem_to_hbm [thread:$0]  %s774, 128, %s776, [#allocation4]
    $region61: #{tpu_custom_call.1} parent=1 // pred_fallthru
      _
    // Predicated region
    $region62: #{tpu_custom_call.1} parent=1 // pred_check
      _
    $region63: #{tpu_custom_call.1} parent=1 // pred_check_branch
      %780 = sbr.rel (0) target = $region65
    $region64: #{tpu_custom_call.1} parent=1 // pred_region
      %782 = vsyncadd [#allocation13], 0
      %s783 = sshll.u32 [#allocation12], 4
      %s784 = int_to_ptr.vmem [resolvable:$true] %s783
      %s785 = sshll.u32 %s10, 4
      %s786 = int_to_ptr.hbm [resolvable:$true] %s785
      %791 = dma.vmem_to_hbm [thread:$0]  %s784, 256, %s786, [#allocation13], 128, 128, 8
    $region65: #{tpu_custom_call.1} parent=1 // pred_fallthru
      _
    // Predicated region
    $region66: #{tpu_custom_call.1} parent=1 // pred_check
      _
    $region67: #{tpu_custom_call.1} parent=1 // pred_check_branch
      %793 = sbr.rel (0) target = $region69
    $region68: #{tpu_custom_call.1} parent=1 // pred_region
      %795 = dma.done [#allocation4], 128
    $region69: #{tpu_custom_call.1} parent=1 // pred_fallthru
      _
    // Predicated region
    $region70: #{tpu_custom_call.1} parent=1 // pred_check
      _
    $region71: #{tpu_custom_call.1} parent=1 // pred_check_branch
      %797 = sbr.rel (0) target = $region73
    $region72: #{tpu_custom_call.1} parent=1 // pred_region
      %799 = dma.done [#allocation13], 256
    $region73: #{tpu_custom_call.1} parent=1 // pred_fallthru
      _
    %800 = vsyncpa [#allocation3], 1
    %801 = vsyncpa [#allocation6], 1
    %802 = vsyncpa [#allocation9], 1
    %803 = vsyncpa [#allocation4], 1
    %804 = vsyncpa [#allocation13], 1

</llo_original>
